<compile_context>
chip_gen: v7x
topology: tpu7x:2x2x1
jax: 0.10.0
libtpu: 0.0.40
codegen_flags: <defaults>
</compile_context>

<pallas_src>
import functools

import jax
import jax.numpy as jnp
from jax.experimental import pallas as pl
from jax.experimental.pallas import tpu as pltpu


def _round_up(x: int, m: int) -> int:
    return ((x + m - 1) // m) * m


def _cdiv(a: int, b: int) -> int:
    return (a + b - 1) // b


# bf16 obs/weights pack (16,128) per vreg; 16-aligned batch tiles avoid sub-tile
# layouts/masking for small batches and keep f32 (8,·) sublane tiling happy too.
_TILE_ALIGN = 16


def _mlp_policy_kernel(obs_ref, w0_ref, b0_ref, w1_ref, b1_ref, w2_ref, b2_ref,
                       mean_ref, *, tanh_bf16: bool):
    # obs arrives f32 straight from HBM; cast to bf16 in-register (no wrapper pass).
    x = obs_ref[...].astype(jnp.bfloat16)

    # Hidden layer 0: Linear (bf16 MXU, f32 acc) + tanh.
    a0 = jnp.dot(x, w0_ref[...], preferred_element_type=jnp.float32) + b0_ref[...]
    if tanh_bf16:
        h = jnp.tanh(a0.astype(jnp.bfloat16))       # bf16 EUP path (v6e / v7x)
    else:
        h = jnp.tanh(a0).astype(jnp.bfloat16)       # f32 EUP path (v5-class)

    # Hidden layer 1: Linear + tanh.
    a1 = jnp.dot(h, w1_ref[...], preferred_element_type=jnp.float32) + b1_ref[...]
    if tanh_bf16:
        h = jnp.tanh(a1.astype(jnp.bfloat16))
    else:
        h = jnp.tanh(a1).astype(jnp.bfloat16)

    # Output layer: Linear (identity output activation, as in ptu.build_mlp).
    mean_ref[...] = (
        jnp.dot(h, w2_ref[...], preferred_element_type=jnp.float32) + b2_ref[...]
    )


def prepare_params(params):
    """One-time parameter prep: pad hidden width to a multiple of 128 lanes and
    cast weight matrices to bf16 (biases / std stay f32)."""
    L = params["w0"].shape[1]
    Lp = _round_up(L, 128)
    dL = Lp - L
    w0 = jnp.pad(params["w0"], ((0, 0), (0, dL))).astype(jnp.bfloat16)
    b0 = jnp.pad(params["b0"], ((0, 0), (0, dL)))
    w1 = jnp.pad(params["w1"], ((0, dL), (0, dL))).astype(jnp.bfloat16)
    b1 = jnp.pad(params["b1"], ((0, 0), (0, dL)))
    w2 = jnp.pad(params["w2"], ((0, dL), (0, 0))).astype(jnp.bfloat16)
    b2 = params["b2"]
    # Padded hidden units: tanh(0 + 0) = 0 and their output-layer rows are 0,
    # so the padded lanes contribute nothing -> numerics unchanged.
    return {"w0": w0, "b0": b0, "w1": w1, "b1": b1,
            "w2": w2, "b2": b2, "std": params["std"]}


def _choose_batch_tile(B: int, block_b: int):
    """Pick a 16-aligned batch tile; prefer >= 2 grid steps (v7x megacore) when
    the batch is large enough to split."""
    ba = _round_up(B, _TILE_ALIGN)
    cap = max(_TILE_ALIGN, (block_b // _TILE_ALIGN) * _TILE_ALIGN)
    if ba >= 2 * _TILE_ALIGN:
        target = _round_up(_cdiv(ba, 2), _TILE_ALIGN)
    else:
        target = ba
    tb = max(_TILE_ALIGN, min(cap, target))
    bp = _round_up(B, tb)
    return tb, bp


def _default_tanh_bf16() -> bool:
    # bf16 tanh on v6e/v7x (bf16 EUP); keep f32 tanh on v5-class chips.
    try:
        kind = jax.devices()[0].device_kind.lower()
    except Exception:
        return True
    return "v5" not in kind


@functools.partial(jax.jit, static_argnames=("block_b", "tanh_bf16"))
def _mlp_policy_forward_impl(obs, prepped, *, block_b: int, tanh_bf16: bool):
    B, ob_dim = obs.shape
    Lp = prepped["w0"].shape[1]
    ac_dim = prepped["w2"].shape[1]

    # std head: ac_dim learnable scalars -> cheapest as plain JAX, not a kernel
    # output stream repeated every grid step.
    std = jax.nn.softplus(prepped["std"][0]) + jnp.float32(0.01)

    TB, Bp = _choose_batch_tile(B, block_b)
    obs_p = obs if Bp == B else jnp.pad(obs, ((0, Bp - B), (0, 0)))
    grid = (Bp // TB,)

    def batch_spec(shape):
        # Tiled along the batch axis -> auto double-buffered HBM<->VMEM pipeline.
        return pl.BlockSpec(shape, lambda i: (i, 0))

    def resident_spec(shape):
        # Constant index_map -> same block every step, stays VMEM-resident.
        return pl.BlockSpec(shape, lambda i: (0, 0))

    flops = 2 * Bp * (ob_dim * Lp + Lp * Lp + Lp * ac_dim)
    bytes_accessed = (
        Bp * ob_dim * 4                                   # obs (f32 in HBM)
        + (ob_dim * Lp + Lp * Lp + Lp * ac_dim) * 2       # weights (bf16)
        + (2 * Lp + ac_dim) * 4                           # biases (f32)
        + Bp * ac_dim * 4                                 # mean (f32)
    )
    cost = pl.CostEstimate(flops=flops, transcendentals=2 * Bp * Lp,
                           bytes_accessed=bytes_accessed)

    kernel = functools.partial(_mlp_policy_kernel, tanh_bf16=tanh_bf16)

    mean = pl.pallas_call(
        kernel,
        out_shape=jax.ShapeDtypeStruct((Bp, ac_dim), jnp.float32),
        grid_spec=pl.GridSpec(
            grid=grid,
            in_specs=[
                batch_spec((TB, ob_dim)),        # obs tile (f32, cast in-kernel)
                resident_spec((ob_dim, Lp)),     # w0
                resident_spec((1, Lp)),          # b0
                resident_spec((Lp, Lp)),         # w1
                resident_spec((1, Lp)),          # b1
                resident_spec((Lp, ac_dim)),     # w2
                resident_spec((1, ac_dim)),      # b2
            ],
            out_specs=batch_spec((TB, ac_dim)),  # mean tile (ac_dim < 128 ->
                                                 # masked store, amortized by TB)
        ),
        compiler_params=pltpu.CompilerParams(
            # Batch axis is fully independent -> megacore sharding on v7x
            # (>= 2 grid steps guaranteed by _choose_batch_tile when B allows),
            # neutral on v5e/v6e.
            dimension_semantics=("parallel",),
            # NOTE: resident weights are double-buffered by default; at these
            # sizes total VMEM is < 1 MiB. If layer_size is ever scaled past
            # ~2-3k, add a K/N tiling axis, use pipeline_mode=pl.Buffered(1) on
            # the weight specs, and set vmem_limit_bytes explicitly (v7x has
            # only 64 MiB physical VMEM).
        ),
        cost_estimate=cost,
    )(obs_p, prepped["w0"], prepped["b0"], prepped["w1"], prepped["b1"],
      prepped["w2"], prepped["b2"])

    return mean[:B], std


def mlp_policy_forward(obs, prepped, *, block_b: int = 2048, tanh_bf16=None):
    """obs: [B, ob_dim] float32. prepped: output of prepare_params.
    Returns (mean [B, ac_dim] f32, std [ac_dim] f32)."""
    if tanh_bf16 is None:
        tanh_bf16 = _default_tanh_bf16()
    return _mlp_policy_forward_impl(obs, prepped, block_b=block_b,
                                    tanh_bf16=bool(tanh_bf16))


def init_params(key, ob_dim, ac_dim, n_layers, layer_size):
    """Deterministic init mimicking torch.nn.Linear default (uniform +-1/sqrt(fan_in))."""
    # TODO(synk): generalize to arbitrary n_layers; this script builds exactly 2.
    assert n_layers == 2, "this script builds exactly 2 hidden layers (n_layers=2)"
    ks = jax.random.split(key, 6)

    def lin(kw, kb, fan_in, fan_out):
        bound = 1.0 / jnp.sqrt(jnp.float32(fan_in))
        w = jax.random.uniform(kw, (fan_in, fan_out), jnp.float32, -bound, bound)
        b = jax.random.uniform(kb, (1, fan_out), jnp.float32, -bound, bound)
        return w, b

    w0, b0 = lin(ks[0], ks[1], ob_dim, layer_size)
    w1, b1 = lin(ks[2], ks[3], layer_size, layer_size)
    w2, b2 = lin(ks[4], ks[5], layer_size, ac_dim)
    # nn.Parameter(torch.full((ac_dim,), 0.0))
    std_param = jnp.zeros((1, ac_dim), jnp.float32)
    return {"w0": w0, "b0": b0, "w1": w1, "b1": b1,
            "w2": w2, "b2": b2, "std": std_param}


def reference_forward_prepped(obs, prepped, *, tanh_bf16: bool):
    """Reference mirroring the kernel's dtype strategy (bf16 MXU, f32 acc)."""
    x = obs.astype(jnp.bfloat16)
    a0 = jnp.dot(x, prepped["w0"], preferred_element_type=jnp.float32) + prepped["b0"]
    h = jnp.tanh(a0.astype(jnp.bfloat16)) if tanh_bf16 else jnp.tanh(a0).astype(jnp.bfloat16)
    a1 = jnp.dot(h, prepped["w1"], preferred_element_type=jnp.float32) + prepped["b1"]
    h = jnp.tanh(a1.astype(jnp.bfloat16)) if tanh_bf16 else jnp.tanh(a1).astype(jnp.bfloat16)
    mean = jnp.dot(h, prepped["w2"], preferred_element_type=jnp.float32) + prepped["b2"]
    std = jax.nn.softplus(prepped["std"][0]) + 0.01
    return mean, std


def reference_forward_f32(obs, params):
    """Pure-f32 reference of the original module (sanity check on bf16 error)."""
    h = jnp.tanh(obs @ params["w0"] + params["b0"])
    h = jnp.tanh(h @ params["w1"] + params["b1"])
    mean = h @ params["w2"] + params["b2"]
    std = jax.nn.softplus(params["std"][0]) + 0.01
    return mean, std


if __name__ == "__main__":
    # Small shapes consistent with the module: batch=8 observations of dim 16,
    # action dim 8, 2 hidden layers of size 32.
    B, OB_DIM, AC_DIM, N_LAYERS, LAYER_SIZE = 8, 16, 8, 2, 32

    key = jax.random.PRNGKey(0)
    k_obs, k_params = jax.random.split(key)
    obs = jax.random.normal(k_obs, (B, OB_DIM), jnp.float32)
    params = init_params(k_params, OB_DIM, AC_DIM, N_LAYERS, LAYER_SIZE)
    prepped = prepare_params(params)

    tanh_bf16 = _default_tanh_bf16()
    mean, std = mlp_policy_forward(obs, prepped, tanh_bf16=tanh_bf16)
    jax.block_until_ready((mean, std))

    mean_ref, std_ref = reference_forward_prepped(obs, prepped, tanh_bf16=tanh_bf16)
    mean_f32, _ = reference_forward_f32(obs, params)

    assert mean.shape == (B, AC_DIM) and std.shape == (AC_DIM,)
    # Kernel matches the bf16/f32-acc mirror reference (tolerance absorbs
    # EUP-vs-XLA tanh ulp differences and accumulation order)...
    assert jnp.allclose(mean, mean_ref, atol=3e-2, rtol=3e-2)
    assert jnp.allclose(std, std_ref, atol=1e-6, rtol=1e-6)
    # ...and the original f32 module semantics within bf16 tolerance.
    assert jnp.allclose(mean, mean_f32, atol=1e-1, rtol=1e-1)

    # TODO(synk): the discrete (Categorical) branch, state_dependent_std chunking,
    # and the tanh-transformed Distribution object are parameterizations built on
    # the same MLP output and are not exercised here; the kernel returns (mean, std).
    print("KERNEL_OK")
</pallas_src>

<mosaic_0001>
module attributes {stable_mosaic.version = 11 : i64} {
  func.func @_mlp_policy_kernel(%arg0: i32, %arg1: memref<16x16xf32, #tpu.memory_space<vmem>>, %arg2: memref<16x128xbf16, #tpu.memory_space<vmem>>, %arg3: memref<1x128xf32, #tpu.memory_space<vmem>>, %arg4: memref<128x128xbf16, #tpu.memory_space<vmem>>, %arg5: memref<1x128xf32, #tpu.memory_space<vmem>>, %arg6: memref<128x8xbf16, #tpu.memory_space<vmem>>, %arg7: memref<1x8xf32, #tpu.memory_space<vmem>>, %arg8: memref<16x8xf32, #tpu.memory_space<vmem>>) attributes {dimension_semantics = [#tpu.dimension_semantics<parallel>], iteration_bounds = array<i64: 1>, scalar_prefetch = 0 : i64, scratch_operands = 0 : i64, tpu.core_type = #tpu.core_type<tc>, window_params = [{transform_indices = @transform_0, window_bounds = array<i64: 16, 16>}, {pipeline_mode = #tpu.pipeline_mode<synchronous>, transform_indices = @transform_1, window_bounds = array<i64: 16, 128>}, {pipeline_mode = #tpu.pipeline_mode<synchronous>, transform_indices = @transform_2, window_bounds = array<i64: 1, 128>}, {pipeline_mode = #tpu.pipeline_mode<synchronous>, transform_indices = @transform_3, window_bounds = array<i64: 128, 128>}, {pipeline_mode = #tpu.pipeline_mode<synchronous>, transform_indices = @transform_4, window_bounds = array<i64: 1, 128>}, {pipeline_mode = #tpu.pipeline_mode<synchronous>, transform_indices = @transform_5, window_bounds = array<i64: 128, 8>}, {pipeline_mode = #tpu.pipeline_mode<synchronous>, transform_indices = @transform_6, window_bounds = array<i64: 1, 8>}, {transform_indices = @transform_7, window_bounds = array<i64: 16, 8>}]} {
    %c0 = arith.constant 0 : index
    %c0_0 = arith.constant 0 : index
    %0 = vector.load %arg1[%c0, %c0_0] : memref<16x16xf32, #tpu.memory_space<vmem>>, vector<16x16xf32>
    %1 = arith.truncf %0 : vector<16x16xf32> to vector<16x16xbf16>
    %c0_1 = arith.constant 0 : index
    %c0_2 = arith.constant 0 : index
    %2 = vector.load %arg2[%c0_1, %c0_2] : memref<16x128xbf16, #tpu.memory_space<vmem>>, vector<16x128xbf16>
    %cst = arith.constant dense<0.000000e+00> : vector<16x128xf32>
    %3 = tpu.matmul %1, %2, %cst {dimension_numbers = #tpu.dot_dimension_numbers<[1], [0], [0], [1], [0, 0, 1, 1], [], []>} : vector<16x16xbf16>, vector<16x128xbf16>, vector<16x128xf32> -> vector<16x128xf32>
    %c0_3 = arith.constant 0 : index
    %c0_4 = arith.constant 0 : index
    %4 = vector.load %arg3[%c0_3, %c0_4] : memref<1x128xf32, #tpu.memory_space<vmem>>, vector<1x128xf32>
    %5 = vector.broadcast %4 : vector<1x128xf32> to vector<16x128xf32>
    %6 = arith.addf %3, %5 : vector<16x128xf32>
    %7 = arith.truncf %6 : vector<16x128xf32> to vector<16x128xbf16>
    %8 = math.tanh %7 : vector<16x128xbf16>
    %c0_5 = arith.constant 0 : index
    %c0_6 = arith.constant 0 : index
    %9 = vector.load %arg4[%c0_5, %c0_6] : memref<128x128xbf16, #tpu.memory_space<vmem>>, vector<128x128xbf16>
    %cst_7 = arith.constant dense<0.000000e+00> : vector<16x128xf32>
    %10 = tpu.matmul %8, %9, %cst_7 {dimension_numbers = #tpu.dot_dimension_numbers<[1], [0], [0], [1], [0, 0, 1, 1], [], []>} : vector<16x128xbf16>, vector<128x128xbf16>, vector<16x128xf32> -> vector<16x128xf32>
    %c0_8 = arith.constant 0 : index
    %c0_9 = arith.constant 0 : index
    %11 = vector.load %arg5[%c0_8, %c0_9] : memref<1x128xf32, #tpu.memory_space<vmem>>, vector<1x128xf32>
    %12 = vector.broadcast %11 : vector<1x128xf32> to vector<16x128xf32>
    %13 = arith.addf %10, %12 : vector<16x128xf32>
    %14 = arith.truncf %13 : vector<16x128xf32> to vector<16x128xbf16>
    %15 = math.tanh %14 : vector<16x128xbf16>
    %c0_10 = arith.constant 0 : index
    %c0_11 = arith.constant 0 : index
    %16 = vector.load %arg6[%c0_10, %c0_11] : memref<128x8xbf16, #tpu.memory_space<vmem>>, vector<128x8xbf16>
    %cst_12 = arith.constant dense<0.000000e+00> : vector<16x8xf32>
    %17 = tpu.matmul %15, %16, %cst_12 {dimension_numbers = #tpu.dot_dimension_numbers<[1], [0], [0], [1], [0, 0, 1, 1], [], []>} : vector<16x128xbf16>, vector<128x8xbf16>, vector<16x8xf32> -> vector<16x8xf32>
    %c0_13 = arith.constant 0 : index
    %c0_14 = arith.constant 0 : index
    %18 = vector.load %arg7[%c0_13, %c0_14] : memref<1x8xf32, #tpu.memory_space<vmem>>, vector<1x8xf32>
    %19 = vector.broadcast %18 : vector<1x8xf32> to vector<16x8xf32>
    %20 = arith.addf %17, %19 : vector<16x8xf32>
    %c0_15 = arith.constant 0 : index
    %c0_16 = arith.constant 0 : index
    %21 = vector.load %arg8[%c0_15, %c0_16] : memref<16x8xf32, #tpu.memory_space<vmem>>, vector<16x8xf32>
    tpu.vector_store %arg8[%c0_15, %c0_16], %20 {strides = array<i32>} : memref<16x8xf32, #tpu.memory_space<vmem>>, vector<16x8xf32>,
    return
  }
  func.func @transform_0(%arg0: i32) -> (i32, i32) {
    %c0_i32 = arith.constant 0 : i32
    %c0_i32_0 = arith.constant 0 : i32
    return %arg0, %c0_i32 : i32, i32
  }
  func.func @transform_1(%arg0: i32) -> (i32, i32) {
    %c0_i32 = arith.constant 0 : i32
    %c0_i32_0 = arith.constant 0 : i32
    %c0_i32_1 = arith.constant 0 : i32
    return %c0_i32, %c0_i32_0 : i32, i32
  }
  func.func @transform_2(%arg0: i32) -> (i32, i32) {
    %c0_i32 = arith.constant 0 : i32
    %c0_i32_0 = arith.constant 0 : i32
    %c0_i32_1 = arith.constant 0 : i32
    return %c0_i32, %c0_i32_0 : i32, i32
  }
  func.func @transform_3(%arg0: i32) -> (i32, i32) {
    %c0_i32 = arith.constant 0 : i32
    %c0_i32_0 = arith.constant 0 : i32
    %c0_i32_1 = arith.constant 0 : i32
    return %c0_i32, %c0_i32_0 : i32, i32
  }
  func.func @transform_4(%arg0: i32) -> (i32, i32) {
    %c0_i32 = arith.constant 0 : i32
    %c0_i32_0 = arith.constant 0 : i32
    %c0_i32_1 = arith.constant 0 : i32
    return %c0_i32, %c0_i32_0 : i32, i32
  }
  func.func @transform_5(%arg0: i32) -> (i32, i32) {
    %c0_i32 = arith.constant 0 : i32
    %c0_i32_0 = arith.constant 0 : i32
    %c0_i32_1 = arith.constant 0 : i32
    return %c0_i32, %c0_i32_0 : i32, i32
  }
  func.func @transform_6(%arg0: i32) -> (i32, i32) {
    %c0_i32 = arith.constant 0 : i32
    %c0_i32_0 = arith.constant 0 : i32
    %c0_i32_1 = arith.constant 0 : i32
    return %c0_i32, %c0_i32_0 : i32, i32
  }
  func.func @transform_7(%arg0: i32) -> (i32, i32) {
    %c0_i32 = arith.constant 0 : i32
    %c0_i32_0 = arith.constant 0 : i32
    return %arg0, %c0_i32 : i32, i32
  }
}

</mosaic_0001>

<llo_original>
// kernel: _mlp_policy_forward_impl.1
$region0: #{_mlp_policy_forward_impl.1}
  #allocation0 [shape = 'u32[]', space=smem, size = 0x4, offset = 0x4, fixed_abs, tag = 'smem constant byte address 0x4 - core index']
  #allocation1 [shape = 'u32[144,128]{1,0:T(1,128)}', space=vmem, size = 0x12000, scoped, tag = 'internal scratch']
  %s0 = inlined_call_operand.vmem [shape: f32[16,16], index: 0, kind: input, shape index: {}]
  %s1 = inlined_call_operand.vmem [shape: bf16[16,128], index: 1, kind: input, shape index: {}]
  %s2 = inlined_call_operand.vmem [shape: f32[1,128], index: 2, kind: input, shape index: {}]
  %s3 = inlined_call_operand.vmem [shape: bf16[128,128], index: 3, kind: input, shape index: {}]
  %s4 = inlined_call_operand.vmem [shape: f32[1,128], index: 4, kind: input, shape index: {}]
  %s5 = inlined_call_operand.vmem [shape: bf16[128,8], index: 5, kind: input, shape index: {}]
  %s6 = inlined_call_operand.vmem [shape: f32[1,8], index: 6, kind: input, shape index: {}]
  %s7 = inlined_call_operand.vmem [shape: f32[16,8], index: 7, kind: output, shape index: {}]
  %s8 = sld [smem:[#allocation0]]
  $region38: #{_mlp_policy_forward_impl.1} parent=0
    _
  %s10 = ssub.s32 1, %s8
  %s11 = scalar_select 0, %s10, %s8
  // Predicated region
  $region2: #{_mlp_policy_forward_impl.1} parent=0 // pred_check
    _
  $region3: #{_mlp_policy_forward_impl.1} parent=0 // pred_check_branch
    %13 = sbr.rel (0) target = $region5
  $region4: #{_mlp_policy_forward_impl.1} parent=0 // pred_region
    _
  $region5: #{_mlp_policy_forward_impl.1} parent=0 // pred_fallthru
    _
  // Predicated region
  $region6: #{_mlp_policy_forward_impl.1} parent=0 // pred_check
    _
  $region7: #{_mlp_policy_forward_impl.1} parent=0 // pred_check_branch
    %15 = sbr.rel (0) target = $region9
  $region8: #{_mlp_policy_forward_impl.1} parent=0 // pred_region
    _
  $region9: #{_mlp_policy_forward_impl.1} parent=0 // pred_fallthru
    _
  // Predicated region
  $region10: #{_mlp_policy_forward_impl.1} parent=0 // pred_check
    _
  $region11: #{_mlp_policy_forward_impl.1} parent=0 // pred_check_branch
    %17 = sbr.rel (0) target = $region13
  $region12: #{_mlp_policy_forward_impl.1} parent=0 // pred_region
    _
  $region13: #{_mlp_policy_forward_impl.1} parent=0 // pred_fallthru
    _
  // Predicated region
  $region14: #{_mlp_policy_forward_impl.1} parent=0 // pred_check
    _
  $region15: #{_mlp_policy_forward_impl.1} parent=0 // pred_check_branch
    %19 = sbr.rel (0) target = $region17
  $region16: #{_mlp_policy_forward_impl.1} parent=0 // pred_region
    _
  $region17: #{_mlp_policy_forward_impl.1} parent=0 // pred_fallthru
    _
  // Predicated region
  $region18: #{_mlp_policy_forward_impl.1} parent=0 // pred_check
    _
  $region19: #{_mlp_policy_forward_impl.1} parent=0 // pred_check_branch
    %21 = sbr.rel (0) target = $region21
  $region20: #{_mlp_policy_forward_impl.1} parent=0 // pred_region
    _
  $region21: #{_mlp_policy_forward_impl.1} parent=0 // pred_fallthru
    _
  // Predicated region
  $region22: #{_mlp_policy_forward_impl.1} parent=0 // pred_check
    _
  $region23: #{_mlp_policy_forward_impl.1} parent=0 // pred_check_branch
    %23 = sbr.rel (0) target = $region25
  $region24: #{_mlp_policy_forward_impl.1} parent=0 // pred_region
    _
  $region25: #{_mlp_policy_forward_impl.1} parent=0 // pred_fallthru
    _
  // Predicated region
  $region26: #{_mlp_policy_forward_impl.1} parent=0 // pred_check
    _
  $region27: #{_mlp_policy_forward_impl.1} parent=0 // pred_check_branch
    %25 = sbr.rel (0) target = $region29
  $region28: #{_mlp_policy_forward_impl.1} parent=0 // pred_region
    _
  $region29: #{_mlp_policy_forward_impl.1} parent=0 // pred_fallthru
    _
  %v27 = vld [vmem:[%s0] sm:$0xff]
  %v28 = vld [vmem:[%s0 + $0x8] sm:$0xff]
  %v29 = vpack.c.bf16 %v28, %v27
  %v30 = vld [vmem:[%s1] sm:$0xf]
  %v31 = vld [vmem:[%s1 + $0x4] sm:$0xf]
  %v32 = vld [vmem:[%s2] sm:$0x1]
  %v34 = vlaneseq
  %v35 = vshrl.u32 %v34, 7
  %v36 = vsub.s32 0, %v35
  %v37 = vrot.slane %v32, %v36
  %v41 = vunpack.c.l.b16 %v30
  %v42 = vunpack.c.l.b16 %v31
  %v43 = vpack.c.b16 %v42, %v41
  %vm45 = vcmask 130048
  %v47 = vsel %vm45, %v29, 0
  %49 = vmatprep.subr.bf16.mxu0 0
  %50 = vmatpush1.bf16.msra.mxu0 %v43
  %51 = vmatprep.subr.bf16.mxu0 0
  %52 = vmatpush1.bf16.msra.mxu0 0
  %53 = vmatprep.subr.bf16.mxu0 0
  %54 = vmatpush1.bf16.msra.mxu0 0
  %55 = vmatprep.subr.bf16.mxu0 0
  %56 = vmatpush1.bf16.msra.mxu0 0
  %57 = vmatprep.subr.bf16.mxu0 0
  %58 = vmatpush1.bf16.msra.mxu0 0
  %59 = vmatprep.subr.bf16.mxu0 0
  %60 = vmatpush1.bf16.msra.mxu0 0
  %61 = vmatprep.subr.bf16.mxu0 0
  %62 = vmatpush1.bf16.msra.mxu0 0
  %63 = vmatprep.subr.bf16.mxu0 0
  %64 = vmatpush1.bf16.msra.mxu0 0
  %65 = vmatprep.subr.bf16.mxu0 0
  %66 = vmatpush1.bf16.msra.mxu0 0
  %67 = vmatprep.subr.bf16.mxu0 0
  %68 = vmatpush1.bf16.msra.mxu0 0
  %69 = vmatprep.subr.bf16.mxu0 0
  %70 = vmatpush1.bf16.msra.mxu0 0
  %71 = vmatprep.subr.bf16.mxu0 0
  %72 = vmatpush1.bf16.msra.mxu0 0
  %73 = vmatprep.subr.bf16.mxu0 0
  %74 = vmatpush1.bf16.msra.mxu0 0
  %75 = vmatprep.subr.bf16.mxu0 0
  %76 = vmatpush1.bf16.msra.mxu0 0
  %77 = vmatprep.subr.bf16.mxu0 0
  %78 = vmatpush1.bf16.msra.mxu0 0
  %79 = vmatprep.subr.bf16.mxu0 0
  %80 = vmatpush1.bf16.msra.mxu0 0
  %81 = vmatprep.mubr.bf16.mxu0 0
  %82 = vmatmul.mubr.bf16.gmra.mrb[0].mxu0 %v47
  %v83 = vpop.f32.mrb[0].mxu0
  %v84 = vadd.f32 %v37, %v83
  %v85 = vpop.f32.mrb[0].mxu0
  %v86 = vpop.f32.mrb[0].mxu0
  %v87 = vadd.f32 %v37, %v86
  %v88 = vpop.f32.mrb[0].mxu0
  %89 = vdwg.mxu0
  %v90 = vpack.c.bf16 %v87, %v84
  %v91 = vtanh.bf16.pop %v90
  %v92 = vld [vmem:[%s3] sm:$0xf]
  %v93 = vld [vmem:[%s3 + $0x4] sm:$0xf]
  %v94 = vld [vmem:[%s3 + $0x8] sm:$0xf]
  %v95 = vld [vmem:[%s3 + $0xc] sm:$0xf]
  %v96 = vld [vmem:[%s3 + $0x10] sm:$0xf]
  %v97 = vld [vmem:[%s3 + $0x14] sm:$0xf]
  %v98 = vld [vmem:[%s3 + $0x18] sm:$0xf]
  %v99 = vld [vmem:[%s3 + $0x1c] sm:$0xf]
  %v100 = vld [vmem:[%s3 + $0x20] sm:$0xf]
  %v101 = vld [vmem:[%s3 + $0x24] sm:$0xf]
  %v102 = vld [vmem:[%s3 + $0x28] sm:$0xf]
  %v103 = vld [vmem:[%s3 + $0x2c] sm:$0xf]
  %v104 = vld [vmem:[%s3 + $0x30] sm:$0xf]
  %v105 = vld [vmem:[%s3 + $0x34] sm:$0xf]
  %v106 = vld [vmem:[%s3 + $0x38] sm:$0xf]
  %v107 = vld [vmem:[%s3 + $0x3c] sm:$0xf]
  %v108 = vld [vmem:[%s4] sm:$0x1]
  %v110 = vlaneseq
  %v111 = vshrl.u32 %v110, 7
  %v112 = vsub.s32 0, %v111
  %v113 = vrot.slane %v108, %v112
  %v131 = vunpack.c.l.b16 %v92
  %v132 = vunpack.c.l.b16 %v93
  %v133 = vunpack.c.l.b16 %v94
  %v134 = vunpack.c.l.b16 %v95
  %v135 = vunpack.c.l.b16 %v96
  %v136 = vunpack.c.l.b16 %v97
  %v137 = vunpack.c.l.b16 %v98
  %v138 = vunpack.c.l.b16 %v99
  %v139 = vunpack.c.l.b16 %v100
  %v140 = vunpack.c.l.b16 %v101
  %v141 = vunpack.c.l.b16 %v102
  %v142 = vunpack.c.l.b16 %v103
  %v143 = vunpack.c.l.b16 %v104
  %v144 = vunpack.c.l.b16 %v105
  %v145 = vunpack.c.l.b16 %v106
  %v146 = vunpack.c.l.b16 %v107
  %v147 = vpack.c.b16 %v132, %v131
  %v148 = vpack.c.b16 %v134, %v133
  %v149 = vpack.c.b16 %v136, %v135
  %v150 = vpack.c.b16 %v138, %v137
  %v151 = vpack.c.b16 %v140, %v139
  %v152 = vpack.c.b16 %v142, %v141
  %v153 = vpack.c.b16 %v144, %v143
  %v154 = vpack.c.b16 %v146, %v145
  %163 = vmatprep.subr.bf16.mxu0 0
  %164 = vmatpush1.bf16.msra.mxu0 %v147
  %165 = vmatprep.subr.bf16.mxu0 0
  %166 = vmatpush1.bf16.msra.mxu0 %v148
  %167 = vmatprep.subr.bf16.mxu0 0
  %168 = vmatpush1.bf16.msra.mxu0 %v149
  %169 = vmatprep.subr.bf16.mxu0 0
  %170 = vmatpush1.bf16.msra.mxu0 %v150
  %171 = vmatprep.subr.bf16.mxu0 0
  %172 = vmatpush1.bf16.msra.mxu0 %v151
  %173 = vmatprep.subr.bf16.mxu0 0
  %174 = vmatpush1.bf16.msra.mxu0 %v152
  %175 = vmatprep.subr.bf16.mxu0 0
  %176 = vmatpush1.bf16.msra.mxu0 %v153
  %177 = vmatprep.subr.bf16.mxu0 0
  %178 = vmatpush1.bf16.msra.mxu0 %v154
  %179 = vmatprep.subr.bf16.mxu0 0
  %180 = vmatpush1.bf16.msra.mxu0 0
  %181 = vmatprep.subr.bf16.mxu0 0
  %182 = vmatpush1.bf16.msra.mxu0 0
  %183 = vmatprep.subr.bf16.mxu0 0
  %184 = vmatpush1.bf16.msra.mxu0 0
  %185 = vmatprep.subr.bf16.mxu0 0
  %186 = vmatpush1.bf16.msra.mxu0 0
  %187 = vmatprep.subr.bf16.mxu0 0
  %188 = vmatpush1.bf16.msra.mxu0 0
  %189 = vmatprep.subr.bf16.mxu0 0
  %190 = vmatpush1.bf16.msra.mxu0 0
  %191 = vmatprep.subr.bf16.mxu0 0
  %192 = vmatpush1.bf16.msra.mxu0 0
  %193 = vmatprep.subr.bf16.mxu0 0
  %194 = vmatpush1.bf16.msra.mxu0 0
  %195 = vmatprep.mubr.bf16.mxu0 0
  %196 = vmatmul.mubr.bf16.gmra.mrb[0].mxu0 %v91
  %v197 = vpop.f32.mrb[0].mxu0
  %v198 = vadd.f32 %v113, %v197
  %v199 = vpop.f32.mrb[0].mxu0
  %v200 = vpop.f32.mrb[0].mxu0
  %v201 = vadd.f32 %v113, %v200
  %v202 = vpop.f32.mrb[0].mxu0
  %203 = vdwg.mxu0
  %v204 = vpack.c.bf16 %v201, %v198
  %v205 = vtanh.bf16.pop %v204
  %v206 = vld [vmem:[%s5] sm:$0xf]
  %v207 = vld [vmem:[%s5 + $0x4] sm:$0xf]
  %v208 = vld [vmem:[%s5 + $0x8] sm:$0xf]
  %v209 = vld [vmem:[%s5 + $0xc] sm:$0xf]
  %v210 = vld [vmem:[%s5 + $0x10] sm:$0xf]
  %v211 = vld [vmem:[%s5 + $0x14] sm:$0xf]
  %v212 = vld [vmem:[%s5 + $0x18] sm:$0xf]
  %v213 = vld [vmem:[%s5 + $0x1c] sm:$0xf]
  %v214 = vld [vmem:[%s5 + $0x20] sm:$0xf]
  %v215 = vld [vmem:[%s5 + $0x24] sm:$0xf]
  %v216 = vld [vmem:[%s5 + $0x28] sm:$0xf]
  %v217 = vld [vmem:[%s5 + $0x2c] sm:$0xf]
  %v218 = vld [vmem:[%s5 + $0x30] sm:$0xf]
  %v219 = vld [vmem:[%s5 + $0x34] sm:$0xf]
  %v220 = vld [vmem:[%s5 + $0x38] sm:$0xf]
  %v221 = vld [vmem:[%s5 + $0x3c] sm:$0xf]
  %v222 = vld [vmem:[%s6] sm:$0x1]
  %v224 = vlaneseq
  %v225 = vshrl.u32 %v224, 7
  %v226 = vsub.s32 0, %v225
  %v227 = vrot.slane %v222, %v226
  %v245 = vunpack.c.l.b16 %v206
  %v246 = vunpack.c.l.b16 %v207
  %v247 = vunpack.c.l.b16 %v208
  %v248 = vunpack.c.l.b16 %v209
  %v249 = vunpack.c.l.b16 %v210
  %v250 = vunpack.c.l.b16 %v211
  %v251 = vunpack.c.l.b16 %v212
  %v252 = vunpack.c.l.b16 %v213
  %v253 = vunpack.c.l.b16 %v214
  %v254 = vunpack.c.l.b16 %v215
  %v255 = vunpack.c.l.b16 %v216
  %v256 = vunpack.c.l.b16 %v217
  %v257 = vunpack.c.l.b16 %v218
  %v258 = vunpack.c.l.b16 %v219
  %v259 = vunpack.c.l.b16 %v220
  %v260 = vunpack.c.l.b16 %v221
  %v261 = vpack.c.b16 %v246, %v245
  %v262 = vpack.c.b16 %v248, %v247
  %v263 = vpack.c.b16 %v250, %v249
  %v264 = vpack.c.b16 %v252, %v251
  %v265 = vpack.c.b16 %v254, %v253
  %v266 = vpack.c.b16 %v256, %v255
  %v267 = vpack.c.b16 %v258, %v257
  %v268 = vpack.c.b16 %v260, %v259
  %277 = vmatprep.subr.bf16.mxu0 0
  %278 = vmatpush1.bf16.msra.mxu0 %v261
  %279 = vmatprep.subr.bf16.mxu0 0
  %280 = vmatpush1.bf16.msra.mxu0 %v262
  %281 = vmatprep.subr.bf16.mxu0 0
  %282 = vmatpush1.bf16.msra.mxu0 %v263
  %283 = vmatprep.subr.bf16.mxu0 0
  %284 = vmatpush1.bf16.msra.mxu0 %v264
  %285 = vmatprep.subr.bf16.mxu0 0
  %286 = vmatpush1.bf16.msra.mxu0 %v265
  %287 = vmatprep.subr.bf16.mxu0 0
  %288 = vmatpush1.bf16.msra.mxu0 %v266
  %289 = vmatprep.subr.bf16.mxu0 0
  %290 = vmatpush1.bf16.msra.mxu0 %v267
  %291 = vmatprep.subr.bf16.mxu0 0
  %292 = vmatpush1.bf16.msra.mxu0 %v268
  %293 = vmatprep.subr.bf16.mxu0 0
  %294 = vmatpush1.bf16.msra.mxu0 0
  %295 = vmatprep.subr.bf16.mxu0 0
  %296 = vmatpush1.bf16.msra.mxu0 0
  %297 = vmatprep.subr.bf16.mxu0 0
  %298 = vmatpush1.bf16.msra.mxu0 0
  %299 = vmatprep.subr.bf16.mxu0 0
  %300 = vmatpush1.bf16.msra.mxu0 0
  %301 = vmatprep.subr.bf16.mxu0 0
  %302 = vmatpush1.bf16.msra.mxu0 0
  %303 = vmatprep.subr.bf16.mxu0 0
  %304 = vmatpush1.bf16.msra.mxu0 0
  %305 = vmatprep.subr.bf16.mxu0 0
  %306 = vmatpush1.bf16.msra.mxu0 0
  %307 = vmatprep.subr.bf16.mxu0 0
  %308 = vmatpush1.bf16.msra.mxu0 0
  %309 = vmatprep.mubr.bf16.mxu0 0
  %310 = vmatmul.mubr.bf16.gmra.mrb[0].mxu0 %v205
  %v311 = vpop.f32.mrb[0].mxu0
  %v312 = vadd.f32 %v227, %v311
  %v313 = vpop.f32.mrb[0].mxu0
  %v314 = vpop.f32.mrb[0].mxu0
  %v315 = vadd.f32 %v227, %v314
  %v316 = vpop.f32.mrb[0].mxu0
  %317 = vdwg.mxu0
  %vm318 = vcmask 64512
  %319 = vst.msk [vmem:[%s7] sm:$0xff] %vm318, %v312
  %320 = vst.msk [vmem:[%s7 + $0x8] sm:$0xff] %vm318, %v315
  // Predicated region
  $region30: #{_mlp_policy_forward_impl.1} parent=0 // pred_check
    _
  $region31: #{_mlp_policy_forward_impl.1} parent=0 // pred_check_branch
    %322 = sbr.rel (0) target = $region33
  $region32: #{_mlp_policy_forward_impl.1} parent=0 // pred_region
    _
  $region33: #{_mlp_policy_forward_impl.1} parent=0 // pred_fallthru
    _
  // Predicated region
  $region34: #{_mlp_policy_forward_impl.1} parent=0 // pred_check
    _
  $region35: #{_mlp_policy_forward_impl.1} parent=0 // pred_check_branch
    %324 = sbr.rel (0) target = $region37
  $region36: #{_mlp_policy_forward_impl.1} parent=0 // pred_region
    _
  $region37: #{_mlp_policy_forward_impl.1} parent=0 // pred_fallthru
    _

</llo_original>
